<compile_context>
chip_gen: v5e
topology: v5e:2x2
jax: 0.10.0
libtpu: 0.0.40
codegen_flags: <defaults>
</compile_context>

<pallas_src>
import functools

import jax
import jax.numpy as jnp
from jax import lax
from jax.experimental import pallas as pl
from jax.experimental.pallas import tpu as pltpu


def _round_up(x, m):
    return (x + m - 1) // m * m


def _supcon_kernel(a_ref, c_ref, lab_col_ref, lab_row_ref, col_bias_ref,
                   out_ref, m_sc, l_sc, s_sc, p_sc, *, inv_temp):
    """One (row-tile i, col-tile j) step of the online SupCon loss.

    a_ref        : (TM, Dp) bf16  anchor feature tile (row tile i)
    c_ref        : (TK, Dp) bf16  contrast feature tile (col tile j)
    lab_col_ref  : (TM, 1)  int32 labels of the anchor rows
    lab_row_ref  : (1, TK)  int32 labels of the contrast cols (-1 on padding)
    col_bias_ref : (1, TK)  f32   0 on real cols, -1e9 on padded cols
    out_ref      : (TM, 1)  f32   mean_log_prob_pos per anchor row
    m/l/s/p_sc   : (TM, 1)  f32   running max / exp-sum / sum(mask*logits) / pos-count
    """
    j = pl.program_id(1)

    @pl.when(j == 0)
    def _():
        m_sc[...] = jnp.full(m_sc.shape, -jnp.inf, dtype=jnp.float32)
        l_sc[...] = jnp.zeros(l_sc.shape, dtype=jnp.float32)
        s_sc[...] = jnp.zeros(s_sc.shape, dtype=jnp.float32)
        p_sc[...] = jnp.zeros(p_sc.shape, dtype=jnp.float32)

    # anchor . contrast^T / temperature : bf16 inputs, f32 accumulation on the MXU.
    adc = lax.dot_general(a_ref[...], c_ref[...], (((1,), (1,)), ((), ())),
                          preferred_element_type=jnp.float32) * inv_temp   # (TM, TK)
    # Padded contrast columns are pushed to -1e9 so exp() underflows to 0.
    adc = adc + col_bias_ref[...]

    # Positive-pair mask from int32 labels (padded labels are -1, never matching real).
    mask = (lab_col_ref[...] == lab_row_ref[...]).astype(jnp.float32)      # (TM, TK)

    # Online softmax denominator (the stabilizer cancels exactly in the loss).
    m_prev = m_sc[...]
    m_new = jnp.maximum(m_prev, jnp.max(adc, axis=1, keepdims=True))
    alpha = jnp.exp(m_prev - m_new)
    l_sc[...] = alpha * l_sc[...] + jnp.sum(jnp.exp(adc - m_new), axis=1, keepdims=True)
    # Positive statistics (independent of the stabilizer).
    s_sc[...] = s_sc[...] + jnp.sum(mask * adc, axis=1, keepdims=True)
    p_sc[...] = p_sc[...] + jnp.sum(mask, axis=1, keepdims=True)
    m_sc[...] = m_new

    @pl.when(j == pl.num_programs(1) - 1)
    def _():
        # Analytic self-contrast removal: adc_ii = ||f_i||^2 / T was counted in
        # l (as exp), in s (mask=1 on the diagonal) and in p (+1).
        a32 = a_ref[...].astype(jnp.float32)
        diag = jnp.sum(a32 * a32, axis=1, keepdims=True) * inv_temp        # (TM, 1)
        m_f = m_sc[...]
        l_f = jnp.maximum(l_sc[...] - jnp.exp(diag - m_f), 1e-30)
        log_z = m_f + jnp.log(l_f)
        p_f = p_sc[...] - 1.0
        s_f = s_sc[...] - diag
        p_cl = jnp.where(p_f < 1e-6, 1.0, p_f)
        # sum(mask * log_prob) = sum(mask * logits) - pos * logZ
        out_ref[...] = (s_f - p_f * log_z) / p_cl


def supcon_loss(support_features, support_labels, temperature=0.07,
                contrast_mode='all', base_temperature=0.07, block_n=256):
    """JAX/Pallas equivalent of SupConLoss.forward(label_similarity, support_features,
    support_labels=..., mask=None, contrastive='Normal'), contrast_mode='all'.

    support_features: [bsz, n_views, ...] ; support_labels: [bsz] integer labels.
    """
    assert contrast_mode == 'all'
    # TODO(synk): contrast_mode='one' and contrastive != 'Normal'
    # (label_similarity reweighting via index_select) paths are not implemented.
    # NOTE: this module's forward never uses base_temperature, so neither do we.
    sf = support_features
    if sf.ndim < 3:
        raise ValueError('`support_features` needs to be [bsz, n_views, ...]')
    if sf.ndim > 3:
        sf = sf.reshape(sf.shape[0], sf.shape[1], -1)
    bsz, n_views, d = sf.shape
    n = bsz * n_views

    # Tile sizes: single tile for small N, 128-lane-aligned tiles otherwise
    # (label row blocks (1, tile) must be 128-divisible unless tile == full dim).
    block_n = int(block_n)
    if n <= block_n:
        tile = _round_up(n, 8)
    else:
        tile = _round_up(min(block_n, n), 128)
    n_pad = _round_up(n, tile)
    d_pad = _round_up(d, 128)

    # [N, D] contrast features, view-major blocks (== torch.cat(torch.unbind(x,1),0)),
    # fed to the MXU in bf16, zero-padded to (n_pad, d_pad).
    contrast_feature = jnp.concatenate(
        [sf[:, v, :] for v in range(n_views)], axis=0)                     # (n, d)
    feat = jnp.zeros((n_pad, d_pad), jnp.bfloat16)
    feat = feat.at[:n, :d].set(contrast_feature.astype(jnp.bfloat16))

    # Tiled labels (int32), sentinel -1 on padded entries; column-validity bias row.
    labels_big = jnp.tile(support_labels.reshape(-1).astype(jnp.int32), n_views)
    lab = jnp.full((n_pad,), -1, dtype=jnp.int32).at[:n].set(labels_big)
    lab_col = lab.reshape(n_pad, 1)
    lab_row = lab.reshape(1, n_pad)
    col_bias = jnp.where(jnp.arange(n_pad) < n, 0.0, -1e9).astype(jnp.float32)
    col_bias = col_bias.reshape(1, n_pad)

    grid = (n_pad // tile, n_pad // tile)
    kernel = functools.partial(_supcon_kernel, inv_temp=1.0 / float(temperature))

    mean_log_prob_pos = pl.pallas_call(
        kernel,
        out_shape=jax.ShapeDtypeStruct((n_pad, 1), jnp.float32),
        grid_spec=pltpu.PrefetchScalarGridSpec(
            num_scalar_prefetch=0,
            grid=grid,
            in_specs=[
                pl.BlockSpec((tile, d_pad), lambda i, j: (i, 0)),  # anchor rows
                pl.BlockSpec((tile, d_pad), lambda i, j: (j, 0)),  # contrast cols
                pl.BlockSpec((tile, 1), lambda i, j: (i, 0)),      # row labels
                pl.BlockSpec((1, tile), lambda i, j: (0, j)),      # col labels
                pl.BlockSpec((1, tile), lambda i, j: (0, j)),      # col validity bias
            ],
            out_specs=pl.BlockSpec((tile, 1), lambda i, j: (i, 0)),
            scratch_shapes=[pltpu.VMEM((tile, 1), jnp.float32)] * 4,
        ),
        compiler_params=pltpu.CompilerParams(
            dimension_semantics=("parallel", "arbitrary"),
            vmem_limit_bytes=32 * 1024 * 1024),
    )(feat, feat, lab_col, lab_row, col_bias)

    # loss = mean over real anchors of -mean_log_prob_pos  (padded rows dropped).
    return -jnp.mean(mean_log_prob_pos[:n, 0])


def _supcon_reference(support_features, support_labels, temperature=0.07):
    """Pure-JAX f32 reference mirroring the PyTorch module (mode='all', 'Normal')."""
    sf = support_features.astype(jnp.float32)
    if sf.ndim > 3:
        sf = sf.reshape(sf.shape[0], sf.shape[1], -1)
    bsz, n_views, _ = sf.shape
    labels = support_labels.reshape(-1, 1)
    mask = (labels == labels.T).astype(jnp.float32)
    contrast = jnp.concatenate([sf[:, v, :] for v in range(n_views)], axis=0)
    adc = (contrast @ contrast.T) / temperature
    logits = adc - jnp.max(adc, axis=1, keepdims=True)
    mask = jnp.tile(mask, (n_views, n_views))
    n = bsz * n_views
    logits_mask = 1.0 - jnp.eye(n, dtype=jnp.float32)
    mask = mask * logits_mask
    exp_logits = jnp.exp(logits) * logits_mask
    log_prob = logits - jnp.log(exp_logits.sum(1, keepdims=True))
    pos = mask.sum(1)
    pos = jnp.where(pos < 1e-6, 1.0, pos)
    mean_log_prob_pos = (mask * log_prob).sum(1) / pos
    return jnp.mean(-mean_log_prob_pos)


if __name__ == "__main__":
    key = jax.random.PRNGKey(0)

    def run_case(case_key, bsz, n_views, d, n_classes, block_n):
        kf, kl = jax.random.split(case_key)
        feats = jax.random.normal(kf, (bsz, n_views, d), dtype=jnp.float32)
        feats = feats / jnp.linalg.norm(feats, axis=-1, keepdims=True)
        # The kernel feeds bf16 to the MXU; give the reference the same
        # bf16-rounded inputs so both paths see identical values.
        feats = feats.astype(jnp.bfloat16)
        labels = jax.random.randint(kl, (bsz,), 0, n_classes, dtype=jnp.int32)

        loss = supcon_loss(feats, labels, temperature=0.07, block_n=block_n)
        loss = jax.block_until_ready(loss)
        ref = _supcon_reference(feats, labels, temperature=0.07)
        assert jnp.allclose(loss, ref, atol=2e-3, rtol=2e-3), (loss, ref)

    k1, k2 = jax.random.split(key)
    # Small single-tile case (N=16, D=32 padded to 128 lanes).
    run_case(k1, bsz=8, n_views=2, d=32, n_classes=3, block_n=256)
    # Multi-tile case with row/column padding (N=144 -> 256, 2x2 grid of 128-tiles).
    run_case(k2, bsz=72, n_views=2, d=40, n_classes=5, block_n=128)

    print("KERNEL_OK")
</pallas_src>

<mosaic_0001>
module attributes {stable_mosaic.version = 11 : i64} {
  func.func @_supcon_kernel(%arg0: i32, %arg1: i32, %arg2: memref<16x128xbf16, #tpu.memory_space<vmem>>, %arg3: memref<16x128xbf16, #tpu.memory_space<vmem>>, %arg4: memref<16x1xi32, #tpu.memory_space<vmem>>, %arg5: memref<1x16xi32, #tpu.memory_space<vmem>>, %arg6: memref<1x16xf32, #tpu.memory_space<vmem>>, %arg7: memref<16x1xf32, #tpu.memory_space<vmem>>, %arg8: memref<16x1xf32, #tpu.memory_space<vmem>>, %arg9: memref<16x1xf32, #tpu.memory_space<vmem>>, %arg10: memref<16x1xf32, #tpu.memory_space<vmem>>, %arg11: memref<16x1xf32, #tpu.memory_space<vmem>>) attributes {dimension_semantics = [#tpu.dimension_semantics<parallel>, #tpu.dimension_semantics<arbitrary>], iteration_bounds = array<i64: 1, 1>, scalar_prefetch = 0 : i64, scratch_operands = 4 : i64, tpu.core_type = #tpu.core_type<tc>, window_params = [{transform_indices = @transform_0, window_bounds = array<i64: 16, 128>}, {transform_indices = @transform_1, window_bounds = array<i64: 16, 128>}, {transform_indices = @transform_2, window_bounds = array<i64: 16, 1>}, {transform_indices = @transform_3, window_bounds = array<i64: 1, 16>}, {transform_indices = @transform_4, window_bounds = array<i64: 1, 16>}, {transform_indices = @transform_5, window_bounds = array<i64: 16, 1>}]} {
    %c0_i32 = arith.constant 0 : i32
    %0 = arith.cmpi eq, %arg1, %c0_i32 : i32
    %1 = arith.extui %0 : i1 to i32
    %c0_i32_0 = arith.constant 0 : i32
    %2 = arith.cmpi ne, %1, %c0_i32_0 : i32
    scf.if %2 {
      %cst_33 = arith.constant 0xFF800000 : f32
      %48 = vector.broadcast %cst_33 : f32 to vector<16x1xf32>
      %c0_34 = arith.constant 0 : index
      %c0_35 = arith.constant 0 : index
      %49 = vector.load %arg8[%c0_34, %c0_35] : memref<16x1xf32, #tpu.memory_space<vmem>>, vector<16x1xf32>
      tpu.vector_store %arg8[%c0_34, %c0_35], %48 {strides = array<i32>} : memref<16x1xf32, #tpu.memory_space<vmem>>, vector<16x1xf32>,
      %cst_36 = arith.constant 0.000000e+00 : f32
      %50 = vector.broadcast %cst_36 : f32 to vector<16x1xf32>
      %c0_37 = arith.constant 0 : index
      %c0_38 = arith.constant 0 : index
      %51 = vector.load %arg9[%c0_37, %c0_38] : memref<16x1xf32, #tpu.memory_space<vmem>>, vector<16x1xf32>
      tpu.vector_store %arg9[%c0_37, %c0_38], %50 {strides = array<i32>} : memref<16x1xf32, #tpu.memory_space<vmem>>, vector<16x1xf32>,
      %cst_39 = arith.constant 0.000000e+00 : f32
      %52 = vector.broadcast %cst_39 : f32 to vector<16x1xf32>
      %c0_40 = arith.constant 0 : index
      %c0_41 = arith.constant 0 : index
      %53 = vector.load %arg10[%c0_40, %c0_41] : memref<16x1xf32, #tpu.memory_space<vmem>>, vector<16x1xf32>
      tpu.vector_store %arg10[%c0_40, %c0_41], %52 {strides = array<i32>} : memref<16x1xf32, #tpu.memory_space<vmem>>, vector<16x1xf32>,
      %cst_42 = arith.constant 0.000000e+00 : f32
      %54 = vector.broadcast %cst_42 : f32 to vector<16x1xf32>
      %c0_43 = arith.constant 0 : index
      %c0_44 = arith.constant 0 : index
      %55 = vector.load %arg11[%c0_43, %c0_44] : memref<16x1xf32, #tpu.memory_space<vmem>>, vector<16x1xf32>
      tpu.vector_store %arg11[%c0_43, %c0_44], %54 {strides = array<i32>} : memref<16x1xf32, #tpu.memory_space<vmem>>, vector<16x1xf32>,
    } else {
    }
    %c0 = arith.constant 0 : index
    %c0_1 = arith.constant 0 : index
    %3 = vector.load %arg2[%c0, %c0_1] : memref<16x128xbf16, #tpu.memory_space<vmem>>, vector<16x128xbf16>
    %c0_2 = arith.constant 0 : index
    %c0_3 = arith.constant 0 : index
    %4 = vector.load %arg3[%c0_2, %c0_3] : memref<16x128xbf16, #tpu.memory_space<vmem>>, vector<16x128xbf16>
    %cst = arith.constant dense<0.000000e+00> : vector<16x16xf32>
    %5 = tpu.matmul %3, %4, %cst {dimension_numbers = #tpu.dot_dimension_numbers<[1], [1], [0], [0], [0, 0, 1, 0], [], []>} : vector<16x128xbf16>, vector<16x128xbf16>, vector<16x16xf32> -> vector<16x16xf32>
    %cst_4 = arith.constant 14.2857141 : f32
    %6 = vector.broadcast %cst_4 : f32 to vector<16x16xf32>
    %7 = arith.mulf %5, %6 : vector<16x16xf32>
    %c0_5 = arith.constant 0 : index
    %c0_6 = arith.constant 0 : index
    %8 = vector.load %arg6[%c0_5, %c0_6] : memref<1x16xf32, #tpu.memory_space<vmem>>, vector<1x16xf32>
    %9 = vector.broadcast %8 : vector<1x16xf32> to vector<16x16xf32>
    %10 = arith.addf %7, %9 : vector<16x16xf32>
    %c0_7 = arith.constant 0 : index
    %c0_8 = arith.constant 0 : index
    %11 = vector.load %arg4[%c0_7, %c0_8] : memref<16x1xi32, #tpu.memory_space<vmem>>, vector<16x1xi32>
    %c0_9 = arith.constant 0 : index
    %c0_10 = arith.constant 0 : index
    %12 = vector.load %arg5[%c0_9, %c0_10] : memref<1x16xi32, #tpu.memory_space<vmem>>, vector<1x16xi32>
    %13 = vector.broadcast %11 : vector<16x1xi32> to vector<16x16xi32>
    %14 = vector.broadcast %12 : vector<1x16xi32> to vector<16x16xi32>
    %15 = arith.cmpi eq, %13, %14 : vector<16x16xi32>
    %16 = arith.extui %15 : vector<16x16xi1> to vector<16x16xi32>
    %17 = arith.sitofp %16 : vector<16x16xi32> to vector<16x16xf32>
    %c0_11 = arith.constant 0 : index
    %c0_12 = arith.constant 0 : index
    %18 = vector.load %arg8[%c0_11, %c0_12] : memref<16x1xf32, #tpu.memory_space<vmem>>, vector<16x1xf32>
    %cst_13 = arith.constant dense<0xFF800000> : vector<16xf32>
    %19 = vector.multi_reduction <maximumf>, %10, %cst_13 [1] : vector<16x16xf32> to vector<16xf32>
    %20 = vector.shape_cast %19 : vector<16xf32> to vector<16x1xf32>
    %21 = arith.maximumf %18, %20 : vector<16x1xf32>
    %22 = arith.subf %18, %21 : vector<16x1xf32>
    %23 = math.exp %22 : vector<16x1xf32>
    %c0_14 = arith.constant 0 : index
    %c0_15 = arith.constant 0 : index
    %24 = vector.load %arg9[%c0_14, %c0_15] : memref<16x1xf32, #tpu.memory_space<vmem>>, vector<16x1xf32>
    %25 = arith.mulf %23, %24 : vector<16x1xf32>
    %26 = vector.broadcast %21 : vector<16x1xf32> to vector<16x16xf32>
    %27 = arith.subf %10, %26 : vector<16x16xf32>
    %28 = math.exp %27 : vector<16x16xf32>
    %cst_16 = arith.constant dense<0.000000e+00> : vector<16xf32>
    %29 = vector.multi_reduction <add>, %28, %cst_16 [1] : vector<16x16xf32> to vector<16xf32>
    %30 = vector.shape_cast %29 : vector<16xf32> to vector<16x1xf32>
    %31 = arith.addf %25, %30 : vector<16x1xf32>
    %c0_17 = arith.constant 0 : index
    %c0_18 = arith.constant 0 : index
    %32 = vector.load %arg9[%c0_17, %c0_18] : memref<16x1xf32, #tpu.memory_space<vmem>>, vector<16x1xf32>
    tpu.vector_store %arg9[%c0_17, %c0_18], %31 {strides = array<i32>} : memref<16x1xf32, #tpu.memory_space<vmem>>, vector<16x1xf32>,
    %c0_19 = arith.constant 0 : index
    %c0_20 = arith.constant 0 : index
    %33 = vector.load %arg10[%c0_19, %c0_20] : memref<16x1xf32, #tpu.memory_space<vmem>>, vector<16x1xf32>
    %34 = arith.mulf %17, %10 : vector<16x16xf32>
    %cst_21 = arith.constant dense<0.000000e+00> : vector<16xf32>
    %35 = vector.multi_reduction <add>, %34, %cst_21 [1] : vector<16x16xf32> to vector<16xf32>
    %36 = vector.shape_cast %35 : vector<16xf32> to vector<16x1xf32>
    %37 = arith.addf %33, %36 : vector<16x1xf32>
    %c0_22 = arith.constant 0 : index
    %c0_23 = arith.constant 0 : index
    %38 = vector.load %arg10[%c0_22, %c0_23] : memref<16x1xf32, #tpu.memory_space<vmem>>, vector<16x1xf32>
    tpu.vector_store %arg10[%c0_22, %c0_23], %37 {strides = array<i32>} : memref<16x1xf32, #tpu.memory_space<vmem>>, vector<16x1xf32>,
    %c0_24 = arith.constant 0 : index
    %c0_25 = arith.constant 0 : index
    %39 = vector.load %arg11[%c0_24, %c0_25] : memref<16x1xf32, #tpu.memory_space<vmem>>, vector<16x1xf32>
    %cst_26 = arith.constant dense<0.000000e+00> : vector<16xf32>
    %40 = vector.multi_reduction <add>, %17, %cst_26 [1] : vector<16x16xf32> to vector<16xf32>
    %41 = vector.shape_cast %40 : vector<16xf32> to vector<16x1xf32>
    %42 = arith.addf %39, %41 : vector<16x1xf32>
    %c0_27 = arith.constant 0 : index
    %c0_28 = arith.constant 0 : index
    %43 = vector.load %arg11[%c0_27, %c0_28] : memref<16x1xf32, #tpu.memory_space<vmem>>, vector<16x1xf32>
    tpu.vector_store %arg11[%c0_27, %c0_28], %42 {strides = array<i32>} : memref<16x1xf32, #tpu.memory_space<vmem>>, vector<16x1xf32>,
    %c0_29 = arith.constant 0 : index
    %c0_30 = arith.constant 0 : index
    %44 = vector.load %arg8[%c0_29, %c0_30] : memref<16x1xf32, #tpu.memory_space<vmem>>, vector<16x1xf32>
    tpu.vector_store %arg8[%c0_29, %c0_30], %21 {strides = array<i32>} : memref<16x1xf32, #tpu.memory_space<vmem>>, vector<16x1xf32>,
    %c0_i32_31 = arith.constant 0 : i32
    %45 = arith.cmpi eq, %arg1, %c0_i32_31 : i32
    %46 = arith.extui %45 : i1 to i32
    %c0_i32_32 = arith.constant 0 : i32
    %47 = arith.cmpi ne, %46, %c0_i32_32 : i32
    scf.if %47 {
      %c0_33 = arith.constant 0 : index
      %c0_34 = arith.constant 0 : index
      %48 = vector.load %arg2[%c0_33, %c0_34] : memref<16x128xbf16, #tpu.memory_space<vmem>>, vector<16x128xbf16>
      %49 = arith.extf %48 : vector<16x128xbf16> to vector<16x128xf32>
      %50 = arith.mulf %49, %49 : vector<16x128xf32>
      %cst_35 = arith.constant dense<0.000000e+00> : vector<16xf32>
      %51 = vector.multi_reduction <add>, %50, %cst_35 [1] : vector<16x128xf32> to vector<16xf32>
      %52 = vector.shape_cast %51 : vector<16xf32> to vector<16x1xf32>
      %cst_36 = arith.constant 14.2857141 : f32
      %53 = vector.broadcast %cst_36 : f32 to vector<16x1xf32>
      %54 = arith.mulf %52, %53 : vector<16x1xf32>
      %c0_37 = arith.constant 0 : index
      %c0_38 = arith.constant 0 : index
      %55 = vector.load %arg8[%c0_37, %c0_38] : memref<16x1xf32, #tpu.memory_space<vmem>>, vector<16x1xf32>
      %c0_39 = arith.constant 0 : index
      %c0_40 = arith.constant 0 : index
      %56 = vector.load %arg9[%c0_39, %c0_40] : memref<16x1xf32, #tpu.memory_space<vmem>>, vector<16x1xf32>
      %57 = arith.subf %54, %55 : vector<16x1xf32>
      %58 = math.exp %57 : vector<16x1xf32>
      %59 = arith.subf %56, %58 : vector<16x1xf32>
      %cst_41 = arith.constant 1.000000e-30 : f32
      %60 = vector.broadcast %cst_41 : f32 to vector<16x1xf32>
      %61 = arith.maximumf %59, %60 : vector<16x1xf32>
      %62 = math.log %61 : vector<16x1xf32>
      %63 = arith.addf %55, %62 : vector<16x1xf32>
      %c0_42 = arith.constant 0 : index
      %c0_43 = arith.constant 0 : index
      %64 = vector.load %arg11[%c0_42, %c0_43] : memref<16x1xf32, #tpu.memory_space<vmem>>, vector<16x1xf32>
      %cst_44 = arith.constant 1.000000e+00 : f32
      %65 = vector.broadcast %cst_44 : f32 to vector<16x1xf32>
      %66 = arith.subf %64, %65 : vector<16x1xf32>
      %c0_45 = arith.constant 0 : index
      %c0_46 = arith.constant 0 : index
      %67 = vector.load %arg10[%c0_45, %c0_46] : memref<16x1xf32, #tpu.memory_space<vmem>>, vector<16x1xf32>
      %68 = arith.subf %67, %54 : vector<16x1xf32>
      %cst_47 = arith.constant 9.99999997E-7 : f32
      %69 = vector.broadcast %cst_47 : f32 to vector<16x1xf32>
      %70 = arith.cmpf olt, %66, %69 : vector<16x1xf32>
      %cst_48 = arith.constant 1.000000e+00 : f32
      %71 = vector.broadcast %cst_48 : f32 to vector<16x1xf32>
      %72 = arith.select %70, %71, %66 : vector<16x1xi1>, vector<16x1xf32>
      %73 = arith.mulf %66, %63 : vector<16x1xf32>
      %74 = arith.subf %68, %73 : vector<16x1xf32>
      %75 = arith.divf %74, %72 : vector<16x1xf32>
      %c0_49 = arith.constant 0 : index
      %c0_50 = arith.constant 0 : index
      %76 = vector.load %arg7[%c0_49, %c0_50] : memref<16x1xf32, #tpu.memory_space<vmem>>, vector<16x1xf32>
      tpu.vector_store %arg7[%c0_49, %c0_50], %75 {strides = array<i32>} : memref<16x1xf32, #tpu.memory_space<vmem>>, vector<16x1xf32>,
    } else {
    }
    return
  }
  func.func @transform_0(%arg0: i32, %arg1: i32) -> (i32, i32) {
    %c0_i32 = arith.constant 0 : i32
    %c0_i32_0 = arith.constant 0 : i32
    return %arg0, %c0_i32 : i32, i32
  }
  func.func @transform_1(%arg0: i32, %arg1: i32) -> (i32, i32) {
    %c0_i32 = arith.constant 0 : i32
    %c0_i32_0 = arith.constant 0 : i32
    return %arg1, %c0_i32 : i32, i32
  }
  func.func @transform_2(%arg0: i32, %arg1: i32) -> (i32, i32) {
    %c0_i32 = arith.constant 0 : i32
    %c0_i32_0 = arith.constant 0 : i32
    return %arg0, %c0_i32 : i32, i32
  }
  func.func @transform_3(%arg0: i32, %arg1: i32) -> (i32, i32) {
    %c0_i32 = arith.constant 0 : i32
    %c0_i32_0 = arith.constant 0 : i32
    return %c0_i32, %arg1 : i32, i32
  }
  func.func @transform_4(%arg0: i32, %arg1: i32) -> (i32, i32) {
    %c0_i32 = arith.constant 0 : i32
    %c0_i32_0 = arith.constant 0 : i32
    return %c0_i32, %arg1 : i32, i32
  }
  func.func @transform_5(%arg0: i32, %arg1: i32) -> (i32, i32) {
    %c0_i32 = arith.constant 0 : i32
    %c0_i32_0 = arith.constant 0 : i32
    return %arg0, %c0_i32 : i32, i32
  }
}

</mosaic_0001>

<llo_original>
// kernel: tpu_custom_call.1
$region0: #{tpu_custom_call.1}
  #allocation0 [shape = 'u32[]', space=smem, size = 0x4, offset = 0x4, fixed_abs, tag = 'smem constant byte address 0x4 - core index']
  #allocation1 [shape = 'u32[72,128]{1,0:T(1,128)}', space=vmem, size = 0x9000, scoped, tag = 'internal scratch']
  #allocation2 [shape = 'f32[16,1]{1,0:T(8,128)}', space=vmem, size = 0x2000, scoped, tag = 'scratch operand']
  #allocation3 [shape = 'f32[16,1]{1,0:T(8,128)}', space=vmem, size = 0x2000, scoped, tag = 'scratch operand']
  #allocation4 [shape = 'f32[16,1]{1,0:T(8,128)}', space=vmem, size = 0x2000, scoped, tag = 'scratch operand']
  #allocation5 [shape = 'f32[16,1]{1,0:T(8,128)}', space=vmem, size = 0x2000, scoped, tag = 'scratch operand']
  %s0 = inlined_call_operand.vmem [shape: bf16[16,128], index: 0, kind: input, shape index: {}]
  %s1 = inlined_call_operand.vmem [shape: bf16[16,128], index: 1, kind: input, shape index: {}]
  %s2 = inlined_call_operand.vmem [shape: s32[16,1], index: 2, kind: input, shape index: {}]
  %s3 = inlined_call_operand.vmem [shape: s32[1,16], index: 3, kind: input, shape index: {}]
  %s4 = inlined_call_operand.vmem [shape: f32[1,16], index: 4, kind: input, shape index: {}]
  %s5 = inlined_call_operand.vmem [shape: f32[16,1], index: 5, kind: output, shape index: {}]
  %s6 = sld [smem:[#allocation0]]
  $region38: #{tpu_custom_call.1} parent=0
    _
  %s8 = ssub.s32 1, %s6
  %s9 = scalar_select 0, %s8, %s6
  // Predicated region
  $region2: #{tpu_custom_call.1} parent=0 // pred_check
    _
  $region3: #{tpu_custom_call.1} parent=0 // pred_check_branch
    %11 = sbr.rel (0) target = $region5
  $region4: #{tpu_custom_call.1} parent=0 // pred_region
    _
  $region5: #{tpu_custom_call.1} parent=0 // pred_fallthru
    _
  // Predicated region
  $region6: #{tpu_custom_call.1} parent=0 // pred_check
    _
  $region7: #{tpu_custom_call.1} parent=0 // pred_check_branch
    %13 = sbr.rel (0) target = $region9
  $region8: #{tpu_custom_call.1} parent=0 // pred_region
    _
  $region9: #{tpu_custom_call.1} parent=0 // pred_fallthru
    _
  // Predicated region
  $region10: #{tpu_custom_call.1} parent=0 // pred_check
    _
  $region11: #{tpu_custom_call.1} parent=0 // pred_check_branch
    %15 = sbr.rel (0) target = $region13
  $region12: #{tpu_custom_call.1} parent=0 // pred_region
    _
  $region13: #{tpu_custom_call.1} parent=0 // pred_fallthru
    _
  // Predicated region
  $region14: #{tpu_custom_call.1} parent=0 // pred_check
    _
  $region15: #{tpu_custom_call.1} parent=0 // pred_check_branch
    %17 = sbr.rel (0) target = $region17
  $region16: #{tpu_custom_call.1} parent=0 // pred_region
    _
  $region17: #{tpu_custom_call.1} parent=0 // pred_fallthru
    _
  // Predicated region
  $region18: #{tpu_custom_call.1} parent=0 // pred_check
    _
  $region19: #{tpu_custom_call.1} parent=0 // pred_check_branch
    %19 = sbr.rel (0) target = $region21
  $region20: #{tpu_custom_call.1} parent=0 // pred_region
    _
  $region21: #{tpu_custom_call.1} parent=0 // pred_fallthru
    _
  %p21 = scmp.eq.s32.totalorder 0, 0
  // Predicated region
  $region22: #{tpu_custom_call.1} parent=0 // pred_check
    %p22 = pneg %p21
  $region23: #{tpu_custom_call.1} parent=0 // pred_check_branch
    %24 = sbr.rel (%p22) target = $region25
  $region24: #{tpu_custom_call.1} parent=0 // pred_region
    %vm25 = vcmask 7168
    %26 = vst.msk [vmem:[#allocation2] sm:$0xff] %vm25, -inf
    %27 = vst.msk [vmem:[#allocation2 + $0x8] sm:$0xff] %vm25, -inf
    %28 = vst.msk [vmem:[#allocation3] sm:$0xff] %vm25, 0.0
    %29 = vst.msk [vmem:[#allocation3 + $0x8] sm:$0xff] %vm25, 0.0
    %30 = vst.msk [vmem:[#allocation4] sm:$0xff] %vm25, 0.0
    %31 = vst.msk [vmem:[#allocation4 + $0x8] sm:$0xff] %vm25, 0.0
    %32 = vst.msk [vmem:[#allocation5] sm:$0xff] %vm25, 0.0
    %33 = vst.msk [vmem:[#allocation5 + $0x8] sm:$0xff] %vm25, 0.0
  $region25: #{tpu_custom_call.1} parent=0 // pred_fallthru
    _
  %v34 = vld [vmem:[%s0] sm:$0xf]
  %v35 = vld [vmem:[%s0 + $0x4] sm:$0xf]
  %v36 = vld [vmem:[%s1] sm:$0xf]
  %v37 = vld [vmem:[%s1 + $0x4] sm:$0xf]
  %v40 = vunpack.c.l.b16 %v34
  %v41 = vunpack.c.l.b16 %v35
  %v42 = vpack.c.b16 %v41, %v40
  %v46 = vunpack.c.l.b16 %v36
  %v47 = vunpack.c.l.b16 %v37
  %v48 = vpack.c.b16 %v47, %v46
  %50 = vmatpush.bf16.xpose.msra.mxu0 0
  %51 = vmatpush.bf16.xpose.msra.mxu0 0
  %52 = vmatpush.bf16.xpose.msra.mxu0 0
  %53 = vmatpush.bf16.xpose.msra.mxu0 0
  %54 = vmatpush.bf16.xpose.msra.mxu0 0
  %55 = vmatpush.bf16.xpose.msra.mxu0 0
  %56 = vmatpush.bf16.xpose.msra.mxu0 0
  %57 = vmatpush.bf16.xpose.msra.mxu0 %v48
  %58 = vmatmul.bf16.gmra.mxu0 %v42
  %v59 = vpop.f32.mrf.mxu0
  %v60 = vadd.f32 0.0, %v59
  %v61 = vpop.f32.mrf.mxu0
  %v62 = vadd.f32 0.0, %v61
  %63 = vdwg.mxu0
  %v64 = vmul.f32 %v60, 14.285714
  %v65 = vmul.f32 %v62, 14.285714
  %v66 = vld [vmem:[%s4] sm:$0x1]
  %v68 = vperm.slane %v66, 0
  %v70 = vadd.f32 %v64, %v68
  %v71 = vadd.f32 %v65, %v68
  %v72 = vld [vmem:[%s2] sm:$0xff]
  %v73 = vld [vmem:[%s2 + $0x8] sm:$0xff]
  %v74 = vld [vmem:[%s3] sm:$0x1]
  %75 = vset.pattern.permute.xlu0 0
  %76 = vperm.xlu0 %75, %v72
  %v77 = vpop.permute.xlu0 %76
  %78 = vset.pattern.permute.xlu0 0
  %79 = vperm.xlu0 %78, %v73
  %v80 = vpop.permute.xlu0 %79
  %v81 = vperm.slane %v74, 0
  %vm82 = vcmp.eq.s32.totalorder %v77, %v81
  %vm83 = vcmp.eq.s32.totalorder %v80, %v81
  %v84 = vsel %vm82, 1, 0
  %v85 = vsel %vm83, 1, 0
  %v86 = vcvt.s32.f32 %v84
  %v87 = vcvt.s32.f32 %v85
  %v88 = vld [vmem:[#allocation2] sm:$0xff]
  %v89 = vld [vmem:[#allocation2 + $0x8] sm:$0xff]
  %vm90 = vcmask 130048
  %v91 = vsel %vm90, %v70, -inf
  %92 = vmax.xlane.f32.xlu0 %v91
  %v93 = vpop.xlane.xlu0 %92
  %v94 = vsel %vm90, %v71, -inf
  %95 = vmax.xlane.f32.xlu0 %v94
  %v96 = vpop.xlane.xlu0 %95
  %v97 = vmax.f32 %v88, %v93
  %v98 = vmax.f32 %v89, %v96
  %v99 = vsub.f32 %v88, %v97
  %v100 = vsub.f32 %v89, %v98
  %v101 = vmul.f32 %v99, 1.442695
  %v102 = vpow.pop %v101
  %v103 = vmul.f32 %v100, 1.442695
  %v104 = vpow.pop %v103
  %v105 = vld [vmem:[#allocation3] sm:$0xff]
  %v106 = vld [vmem:[#allocation3 + $0x8] sm:$0xff]
  %v107 = vmul.f32 %v102, %v105
  %v108 = vmul.f32 %v104, %v106
  %110 = vset.pattern.permute.xlu0 0
  %111 = vperm.xlu0 %110, %v97
  %v112 = vpop.permute.xlu0 %111
  %115 = vset.pattern.permute.xlu0 0
  %116 = vperm.xlu0 %115, %v98
  %v117 = vpop.permute.xlu0 %116
  %v119 = vsub.f32 %v70, %v112
  %v120 = vsub.f32 %v71, %v117
  %v121 = vmul.f32 %v119, 1.442695
  %v122 = vpow.pop %v121
  %v123 = vmul.f32 %v120, 1.442695
  %v124 = vpow.pop %v123
  %v125 = vsel %vm90, %v122, 0.0
  %126 = vadd.xlane.f32.xlu0 %v125
  %v127 = vpop.xlane.xlu0 %126
  %v128 = vsel %vm90, %v124, 0.0
  %129 = vadd.xlane.f32.xlu0 %v128
  %v130 = vpop.xlane.xlu0 %129
  %v131 = vadd.f32 %v107, %v127
  %v132 = vadd.f32 %v108, %v130
  %vm133 = vcmask 7168
  %134 = vst.msk [vmem:[#allocation3] sm:$0xff] %vm133, %v131
  %135 = vst.msk [vmem:[#allocation3 + $0x8] sm:$0xff] %vm133, %v132
  %v136 = vld [vmem:[#allocation4] sm:$0xff]
  %v137 = vld [vmem:[#allocation4 + $0x8] sm:$0xff]
  %v138 = vmul.f32 %v86, %v70
  %v139 = vmul.f32 %v87, %v71
  %v140 = vsel %vm90, %v138, 0.0
  %141 = vadd.xlane.f32.xlu0 %v140
  %v142 = vpop.xlane.xlu0 %141
  %v143 = vsel %vm90, %v139, 0.0
  %144 = vadd.xlane.f32.xlu0 %v143
  %v145 = vpop.xlane.xlu0 %144
  %v146 = vadd.f32 %v136, %v142
  %v147 = vadd.f32 %v137, %v145
  %148 = vst.msk [vmem:[#allocation4] sm:$0xff] %vm133, %v146
  %149 = vst.msk [vmem:[#allocation4 + $0x8] sm:$0xff] %vm133, %v147
  %v150 = vld [vmem:[#allocation5] sm:$0xff]
  %v151 = vld [vmem:[#allocation5 + $0x8] sm:$0xff]
  %v152 = vsel %vm90, %v86, 0.0
  %153 = vadd.xlane.f32.xlu0 %v152
  %v154 = vpop.xlane.xlu0 %153
  %v155 = vsel %vm90, %v87, 0.0
  %156 = vadd.xlane.f32.xlu0 %v155
  %v157 = vpop.xlane.xlu0 %156
  %v158 = vadd.f32 %v150, %v154
  %v159 = vadd.f32 %v151, %v157
  %160 = vst.msk [vmem:[#allocation5] sm:$0xff] %vm133, %v158
  %161 = vst.msk [vmem:[#allocation5 + $0x8] sm:$0xff] %vm133, %v159
  %162 = vst.msk [vmem:[#allocation2] sm:$0xff] %vm133, %v97
  %163 = vst.msk [vmem:[#allocation2 + $0x8] sm:$0xff] %vm133, %v98
  // Predicated region
  $region26: #{tpu_custom_call.1} parent=0 // pred_check
    %p164 = pneg %p21
  $region27: #{tpu_custom_call.1} parent=0 // pred_check_branch
    %166 = sbr.rel (%p164) target = $region29
  $region28: #{tpu_custom_call.1} parent=0 // pred_region
    %v167 = vld [vmem:[%s0] sm:$0xf]
    %v168 = vld [vmem:[%s0 + $0x4] sm:$0xf]
    %v169 = vunpack.c.l.bf16 %v167
    %v170 = vunpack.c.l.bf16 %v168
    %v171 = vmul.f32 %v169, %v169
    %v172 = vmul.f32 %v170, %v170
    %173 = vadd.xlane.f32.xlu0 %v171
    %v174 = vpop.xlane.xlu0 %173
    %175 = vadd.xlane.f32.xlu0 %v172
    %v176 = vpop.xlane.xlu0 %175
    %v177 = vmul.f32 %v174, 14.285714
    %v178 = vmul.f32 %v176, 14.285714
    %v179 = vld [vmem:[#allocation2] sm:$0xff]
    %v180 = vld [vmem:[#allocation2 + $0x8] sm:$0xff]
    %v181 = vld [vmem:[#allocation3] sm:$0xff]
    %v182 = vld [vmem:[#allocation3 + $0x8] sm:$0xff]
    %v183 = vsub.f32 %v177, %v179
    %v184 = vsub.f32 %v178, %v180
    %v185 = vmul.f32 %v183, 1.442695
    %v186 = vpow.pop %v185
    %v187 = vmul.f32 %v184, 1.442695
    %v188 = vpow.pop %v187
    %v189 = vsub.f32 %v181, %v186
    %v190 = vsub.f32 %v182, %v188
    %v191 = vmax.f32 %v189, 1e-30
    %v192 = vmax.f32 %v190, 1e-30
    %v193 = vlog2.pop %v191
    %v194 = vmul.f32 %v193, 0.6931472
    %v195 = vlog2.pop %v192
    %v196 = vmul.f32 %v195, 0.6931472
    %v197 = vadd.f32 %v179, %v194
    %v198 = vadd.f32 %v180, %v196
    %v199 = vld [vmem:[#allocation5] sm:$0xff]
    %v200 = vld [vmem:[#allocation5 + $0x8] sm:$0xff]
    %v201 = vsub.f32 %v199, 1.0
    %v202 = vsub.f32 %v200, 1.0
    %v203 = vld [vmem:[#allocation4] sm:$0xff]
    %v204 = vld [vmem:[#allocation4 + $0x8] sm:$0xff]
    %v205 = vsub.f32 %v203, %v177
    %v206 = vsub.f32 %v204, %v178
    %vm207 = vcmp.lt.f32.partialorder %v201, 1e-06
    %vm208 = vcmp.lt.f32.partialorder %v202, 1e-06
    %v209 = vsel %vm207, 1.0, %v201
    %v210 = vsel %vm208, 1.0, %v202
    %v211 = vmul.f32 %v201, %v197
    %v212 = vmul.f32 %v202, %v198
    %v213 = vsub.f32 %v205, %v211
    %v214 = vsub.f32 %v206, %v212
    %v215 = vrcp.pop %v209
    %v216 = vmul.f32 %v209, %v215
    %v217 = vsub.f32 1.0, %v216
    %v218 = vmul.f32 %v215, %v217
    %v219 = vadd.f32 %v215, %v218
    %vm220 = vweird.f32 %v209
    %vm221 = vweird.f32 %v215
    %vm222 = vmor %vm220, %vm221
    %v223 = vsel %vm222, %v215, %v219
    %v224 = vand.u32 2147483647, %v209
    %vm225 = vcmp.eq.f32.partialorder %v224, 8.507059e+37
    %v226 = vand.u32 %v209, 2147483648
    %v227 = vor.u32 1.1754944e-38, %v226
    %v228 = vsel %vm225, %v227, %v223
    %v229 = vmul.f32 %v213, %v228
    %v230 = vrcp.pop %v210
    %v231 = vmul.f32 %v210, %v230
    %v232 = vsub.f32 1.0, %v231
    %v233 = vmul.f32 %v230, %v232
    %v234 = vadd.f32 %v230, %v233
    %vm235 = vweird.f32 %v210
    %vm236 = vweird.f32 %v230
    %vm237 = vmor %vm235, %vm236
    %v238 = vsel %vm237, %v230, %v234
    %v239 = vand.u32 2147483647, %v210
    %vm240 = vcmp.eq.f32.partialorder %v239, 8.507059e+37
    %v241 = vand.u32 %v210, 2147483648
    %v242 = vor.u32 1.1754944e-38, %v241
    %v243 = vsel %vm240, %v242, %v238
    %v244 = vmul.f32 %v214, %v243
    %245 = vst.msk [vmem:[%s5] sm:$0xff] %vm133, %v229
    %246 = vst.msk [vmem:[%s5 + $0x8] sm:$0xff] %vm133, %v244
  $region29: #{tpu_custom_call.1} parent=0 // pred_fallthru
    _
  // Predicated region
  $region30: #{tpu_custom_call.1} parent=0 // pred_check
    _
  $region31: #{tpu_custom_call.1} parent=0 // pred_check_branch
    %248 = sbr.rel (0) target = $region33
  $region32: #{tpu_custom_call.1} parent=0 // pred_region
    _
  $region33: #{tpu_custom_call.1} parent=0 // pred_fallthru
    _
  // Predicated region
  $region34: #{tpu_custom_call.1} parent=0 // pred_check
    _
  $region35: #{tpu_custom_call.1} parent=0 // pred_check_branch
    %250 = sbr.rel (0) target = $region37
  $region36: #{tpu_custom_call.1} parent=0 // pred_region
    _
  $region37: #{tpu_custom_call.1} parent=0 // pred_fallthru
    _

</llo_original>
